<compile_context>
chip_gen: v7x
topology: tpu7x:2x2x1
jax: 0.10.0
libtpu: 0.0.40
codegen_flags: <defaults>
</compile_context>

<pallas_src>
import functools

import jax
import jax.numpy as jnp
import numpy as np
from jax import lax
from jax.experimental import pallas as pl
from jax.experimental.pallas import tpu as pltpu


_TARGET_BLOCK_BYTES = 4 * 1024 * 1024   # per input block; x2 for double buffering
_VMEM_LIMIT_BYTES = 24 * 1024 * 1024    # fits v5e/v6e/v7x with headroom


def _ceil_div(a, b):
    return -(-a // b)


def _round_up(a, b):
    return _ceil_div(a, b) * b


def _sublane_packing(dtype):
    """Sublane packing multiple: 8 for 32-bit, 16 for 16-bit, 32 for 8-bit."""
    return max(8, 32 // jnp.dtype(dtype).itemsize)


def _minmax_kernel(x_ref, min_ref, max_ref, *, n_rem):
    """Row-wise min/max of a (R, N) slab.

    Grid: (row_blocks [parallel], feature_tiles [arbitrary]).  The (RB, 1) f32 outputs
    stay resident across the feature (reduction) axis.  `n_rem` (static) is the number
    of valid lanes in the final feature tile; 0 means every tile is full (no masking).
    Reduction happens in the input's native dtype (exact for min/max); only the (RB, 1)
    partials are widened to f32.
    """
    j = pl.program_id(1)
    nj = pl.num_programs(1)

    def accumulate(tile_min, tile_max):
        @pl.when(j == 0)
        def _():
            min_ref[...] = tile_min
            max_ref[...] = tile_max

        @pl.when(j > 0)
        def _():
            min_ref[...] = jnp.minimum(min_ref[...], tile_min)
            max_ref[...] = jnp.maximum(max_ref[...], tile_max)

    def full_tile():
        x = x_ref[...]                               # native dtype
        accumulate(jnp.min(x, axis=-1, keepdims=True).astype(jnp.float32),
                   jnp.max(x, axis=-1, keepdims=True).astype(jnp.float32))

    if n_rem == 0:
        full_tile()
    else:
        @pl.when(j < nj - 1)
        def _():
            full_tile()

        @pl.when(j == nj - 1)          # mask only the ragged last tile
        def _():
            x = x_ref[...]
            if jnp.issubdtype(x.dtype, jnp.floating):
                lo = jnp.array(-jnp.inf, x.dtype)
                hi = jnp.array(jnp.inf, x.dtype)
            else:
                info = jnp.iinfo(x.dtype)
                lo = jnp.array(info.min, x.dtype)
                hi = jnp.array(info.max, x.dtype)
            cols = lax.broadcasted_iota(jnp.int32, x.shape, 1)
            valid = cols < n_rem
            accumulate(
                jnp.min(jnp.where(valid, x, hi), axis=-1, keepdims=True).astype(jnp.float32),
                jnp.max(jnp.where(valid, x, lo), axis=-1, keepdims=True).astype(jnp.float32))


def _choose_tiles(R, N, dtype, target_bytes):
    """Pick (row_block, feature_tile) so a block's *padded* footprint is ~target_bytes."""
    itemsize = jnp.dtype(dtype).itemsize
    packing = _sublane_packing(dtype)
    lane_chunks = _ceil_div(N, 128)
    row_bytes_full = lane_chunks * 128 * itemsize          # one lane-padded row
    r_pad = _round_up(R, packing)                          # sublane-padded full-R block

    # Row block: full R if the (padded) full-row block fits, else a packing multiple.
    if R <= packing or r_pad * row_bytes_full <= target_bytes:
        rb = R
    else:
        rows_fit = (target_bytes // row_bytes_full // packing) * packing
        rb = min(R, max(packing, rows_fit))

    # Megacore (v7x): give the "parallel" row axis >= 2 blocks when the whole slab
    # would otherwise be a single row block.  Harmless on single-TC v5e/v6e.
    if rb >= R and R >= 2 * packing:
        rb = _round_up(_ceil_div(R, 2), packing)

    # Feature tile: as many 128-lane chunks as fit, sized from the *padded* row block.
    rb_pad = _round_up(rb, packing)
    block_chunk_bytes = rb_pad * 128 * itemsize
    chunks_fit = max(1, target_bytes // block_chunk_bytes)
    tile = N if chunks_fit >= lane_chunks else int(chunks_fit) * 128
    return int(rb), int(tile)


def _minmax_2d(x2d, target_block_bytes=_TARGET_BLOCK_BYTES):
    """Row-wise min/max of a (R, N) array -> ((R,) min_f32, (R,) max_f32)."""
    R, N = x2d.shape
    itemsize = jnp.dtype(x2d.dtype).itemsize
    rb, tile = _choose_tiles(R, N, x2d.dtype, target_block_bytes)
    n_rem = 0 if tile >= N else (N % tile)
    grid = (pl.cdiv(R, rb), pl.cdiv(N, tile))

    kernel = functools.partial(_minmax_kernel, n_rem=n_rem)
    out_min, out_max = pl.pallas_call(
        kernel,
        out_shape=(jax.ShapeDtypeStruct((R, 1), jnp.float32),
                   jax.ShapeDtypeStruct((R, 1), jnp.float32)),
        grid_spec=pltpu.PrefetchScalarGridSpec(
            num_scalar_prefetch=0,
            grid=grid,
            in_specs=[pl.BlockSpec((rb, tile), lambda i, j: (i, j))],
            out_specs=(pl.BlockSpec((rb, 1), lambda i, j: (i, 0)),
                       pl.BlockSpec((rb, 1), lambda i, j: (i, 0))),
        ),
        compiler_params=pltpu.CompilerParams(
            dimension_semantics=("parallel", "arbitrary"),
            vmem_limit_bytes=_VMEM_LIMIT_BYTES),
        cost_estimate=pl.CostEstimate(
            flops=2 * R * N, transcendentals=0,
            bytes_accessed=R * N * itemsize + 8 * R),
    )(x2d)
    return out_min[:, 0], out_max[:, 0]


def _fold_rows(x2d, packing):
    """Reshape (R, N) -> (R*k, N//k) (free, contiguous) to raise sublane occupancy and
    give the parallel row axis >= 2 blocks; caller re-folds the k partials per row."""
    R, N = x2d.shape
    target = 2 * packing
    if R >= target or N <= 1:
        return x2d, 1
    # Prefer folds that keep the width a multiple of 128 (full lane occupancy).
    need = _ceil_div(target, R)
    for k in range(need, min(N, 64 * packing) + 1):
        if N % k == 0 and (N // k) % 128 == 0:
            return x2d.reshape(R * k, N // k), k
    if R >= packing:
        return x2d, 1
    # At least fill the sublanes even if the width goes below 128 lanes.
    need = _ceil_div(packing, R)
    for k in range(need, min(N, 8 * packing) + 1):
        if N % k == 0:
            return x2d.reshape(R * k, N // k), k
    return x2d, 1


def _pick_global_width(total, packing):
    """Sublane-dense width W (multiple of 128) with total % W == 0; prefer 2*packing rows."""
    cands = (16384, 8192, 4096, 2048, 1024, 512, 256, 128)
    for min_rows in (2 * packing, packing):
        for w in cands:
            if total % w == 0 and total // w >= min_rows:
                return w
    return None


@functools.partial(jax.jit, static_argnames=("per_channel",))
def _current_minmax(x, *, per_channel):
    packing = _sublane_packing(x.dtype)

    if per_channel:
        x2d = x.reshape(x.shape[0], -1)
        R = x2d.shape[0]
        folded, k = _fold_rows(x2d, packing)
        pmn, pmx = _minmax_2d(folded)
        if k > 1:
            pmn = jnp.min(pmn.reshape(R, k), axis=-1)
            pmx = jnp.max(pmx.reshape(R, k), axis=-1)
        return pmn.astype(x.dtype), pmx.astype(x.dtype)

    flat = x.reshape(-1)
    total = flat.shape[0]

    w = _pick_global_width(total, packing)
    if w is not None:
        pmn, pmx = _minmax_2d(flat.reshape(total // w, w))
        return jnp.min(pmn).astype(x.dtype), jnp.max(pmx).astype(x.dtype)

    # Ragged total: reduce the largest dense (rows, w) prefix with the kernel and fold
    # the tiny tail in the wrapper (keeps full vreg occupancy, no per-step masking).
    cands = (16384, 8192, 4096, 2048, 1024, 512, 256, 128)
    w = None
    for min_rows in (2 * packing, packing):
        for c in cands:
            if total >= min_rows * c:
                w = c
                break
        if w is not None:
            break
    if w is None:
        # Tiny input (< packing*128 elements): kernel/grid overhead dominates.
        xf = flat.astype(jnp.float32)
        return jnp.min(xf).astype(x.dtype), jnp.max(xf).astype(x.dtype)

    rows = total // w
    prefix = rows * w
    pmn, pmx = _minmax_2d(flat[:prefix].reshape(rows, w))
    gmn = jnp.min(pmn)
    gmx = jnp.max(pmx)
    if prefix < total:
        tail = flat[prefix:].astype(jnp.float32)
        gmn = jnp.minimum(gmn, jnp.min(tail))
        gmx = jnp.maximum(gmx, jnp.max(tail))
    return gmn.astype(x.dtype), gmx.astype(x.dtype)


class CurrentMinMaxEstimator:
    """JAX/Pallas port of the PyTorch CurrentMinMaxEstimator."""

    def __init__(self, percentile=None, per_channel=False, quantizer=None):
        self.percentile = percentile
        self.per_channel = per_channel
        self.quantizer = quantizer
        self.current_xmin = None
        self.current_xmax = None

    def reset(self):
        self.current_xmin = None
        self.current_xmax = None

    def __call__(self, x):
        return self.forward(x)

    def forward(self, x):
        if self.percentile:
            # TODO(synk): percentile path (np.percentile) has no clean Pallas equivalent
            # (sort/selection); implemented with jnp.percentile in the wrapper.
            axis = -1 if self.per_channel else None
            xv = x.reshape(x.shape[0], -1) if self.per_channel else x
            qs = jnp.percentile(
                xv, jnp.array([self.percentile, 100.0 - self.percentile]), axis=axis)
            self.current_xmin, self.current_xmax = qs[0], qs[1]
        else:
            self.current_xmin, self.current_xmax = _current_minmax(
                x, per_channel=self.per_channel)
        return self.current_xmin, self.current_xmax


if __name__ == "__main__":
    key = jax.random.PRNGKey(0)
    k1, k2, k3 = jax.random.split(key, 3)

    # NCHW activation-like input, matching the PyTorch module's expected layout.
    x = jax.random.normal(k1, (2, 4, 16, 16), dtype=jnp.float32)
    x_np = np.asarray(x)

    # --- global (per_channel=False) ---
    est = CurrentMinMaxEstimator(per_channel=False)
    mn, mx = est(x)
    jax.block_until_ready((mn, mx))
    np.testing.assert_allclose(np.asarray(mn), x_np.min(), rtol=1e-6)
    np.testing.assert_allclose(np.asarray(mx), x_np.max(), rtol=1e-6)

    # --- per_channel=True (row-wise over dim 0 after view(x.shape[0], -1)) ---
    est_pc = CurrentMinMaxEstimator(per_channel=True)
    pmn, pmx = est_pc(x)
    jax.block_until_ready((pmn, pmx))
    xf = x_np.reshape(x_np.shape[0], -1)
    np.testing.assert_allclose(np.asarray(pmn), xf.min(axis=-1), rtol=1e-6)
    np.testing.assert_allclose(np.asarray(pmx), xf.max(axis=-1), rtol=1e-6)

    # --- native-dtype streaming (bf16, packing=16 fold path) ---
    xb = jax.random.normal(k2, (2, 4, 16, 16), dtype=jnp.float32).astype(jnp.bfloat16)
    bmn, bmx = CurrentMinMaxEstimator(per_channel=True)(xb)
    jax.block_until_ready((bmn, bmx))
    xb32 = np.asarray(xb.astype(jnp.float32)).reshape(2, -1)
    np.testing.assert_allclose(np.asarray(bmn.astype(jnp.float32)), xb32.min(axis=-1))
    np.testing.assert_allclose(np.asarray(bmx.astype(jnp.float32)), xb32.max(axis=-1))

    # --- non-power-of-two shape (dense-prefix + tail global fallback) ---
    xo = jax.random.normal(k3, (3, 5, 7, 11), dtype=jnp.float32)
    omn, omx = CurrentMinMaxEstimator(per_channel=False)(xo)
    jax.block_until_ready((omn, omx))
    np.testing.assert_allclose(np.asarray(omn), np.asarray(xo).min(), rtol=1e-6)
    np.testing.assert_allclose(np.asarray(omx), np.asarray(xo).max(), rtol=1e-6)

    # --- ragged final feature tile: force a small block so in-kernel masking runs ---
    xr = jax.random.normal(k3, (4, 1000), dtype=jnp.float32)
    rmn, rmx = _minmax_2d(xr, target_block_bytes=8192)   # -> tile=256, rem=232
    jax.block_until_ready((rmn, rmx))
    xr_np = np.asarray(xr)
    np.testing.assert_allclose(np.asarray(rmn), xr_np.min(axis=-1), rtol=1e-6)
    np.testing.assert_allclose(np.asarray(rmx), xr_np.max(axis=-1), rtol=1e-6)

    print("KERNEL_OK")
</pallas_src>

<mosaic_0001>
module attributes {stable_mosaic.version = 11 : i64} {
  func.func @_minmax_kernel(%arg0: i32, %arg1: i32, %arg2: memref<8x128xf32, #tpu.memory_space<vmem>>, %arg3: memref<8x1xf32, #tpu.memory_space<vmem>>, %arg4: memref<8x1xf32, #tpu.memory_space<vmem>>) attributes {dimension_semantics = [#tpu.dimension_semantics<parallel>, #tpu.dimension_semantics<arbitrary>], iteration_bounds = array<i64: 2, 1>, scalar_prefetch = 0 : i64, scratch_operands = 0 : i64, tpu.core_type = #tpu.core_type<tc>, window_params = [{transform_indices = @transform_0, window_bounds = array<i64: 8, 128>}, {transform_indices = @transform_1, window_bounds = array<i64: 8, 1>}, {transform_indices = @transform_2, window_bounds = array<i64: 8, 1>}]} {
    %c0 = arith.constant 0 : index
    %c0_0 = arith.constant 0 : index
    %0 = vector.load %arg2[%c0, %c0_0] : memref<8x128xf32, #tpu.memory_space<vmem>>, vector<8x128xf32>
    %cst = arith.constant dense<0x7F800000> : vector<8xf32>
    %1 = vector.multi_reduction <minimumf>, %0, %cst [1] : vector<8x128xf32> to vector<8xf32>
    %2 = vector.shape_cast %1 : vector<8xf32> to vector<8x1xf32>
    %cst_1 = arith.constant dense<0xFF800000> : vector<8xf32>
    %3 = vector.multi_reduction <maximumf>, %0, %cst_1 [1] : vector<8x128xf32> to vector<8xf32>
    %4 = vector.shape_cast %3 : vector<8xf32> to vector<8x1xf32>
    %c0_i32 = arith.constant 0 : i32
    %5 = arith.cmpi eq, %arg1, %c0_i32 : i32
    %6 = arith.extui %5 : i1 to i32
    %c0_i32_2 = arith.constant 0 : i32
    %7 = arith.cmpi ne, %6, %c0_i32_2 : i32
    scf.if %7 {
      %c0_5 = arith.constant 0 : index
      %c0_6 = arith.constant 0 : index
      %11 = vector.load %arg3[%c0_5, %c0_6] : memref<8x1xf32, #tpu.memory_space<vmem>>, vector<8x1xf32>
      tpu.vector_store %arg3[%c0_5, %c0_6], %2 {strides = array<i32>} : memref<8x1xf32, #tpu.memory_space<vmem>>, vector<8x1xf32>,
      %c0_7 = arith.constant 0 : index
      %c0_8 = arith.constant 0 : index
      %12 = vector.load %arg4[%c0_7, %c0_8] : memref<8x1xf32, #tpu.memory_space<vmem>>, vector<8x1xf32>
      tpu.vector_store %arg4[%c0_7, %c0_8], %4 {strides = array<i32>} : memref<8x1xf32, #tpu.memory_space<vmem>>, vector<8x1xf32>,
    } else {
    }
    %c0_i32_3 = arith.constant 0 : i32
    %8 = arith.cmpi sgt, %arg1, %c0_i32_3 : i32
    %9 = arith.extui %8 : i1 to i32
    %c0_i32_4 = arith.constant 0 : i32
    %10 = arith.cmpi ne, %9, %c0_i32_4 : i32
    scf.if %10 {
      %c0_5 = arith.constant 0 : index
      %c0_6 = arith.constant 0 : index
      %11 = vector.load %arg3[%c0_5, %c0_6] : memref<8x1xf32, #tpu.memory_space<vmem>>, vector<8x1xf32>
      %12 = arith.minimumf %11, %2 : vector<8x1xf32>
      %c0_7 = arith.constant 0 : index
      %c0_8 = arith.constant 0 : index
      %13 = vector.load %arg3[%c0_7, %c0_8] : memref<8x1xf32, #tpu.memory_space<vmem>>, vector<8x1xf32>
      tpu.vector_store %arg3[%c0_7, %c0_8], %12 {strides = array<i32>} : memref<8x1xf32, #tpu.memory_space<vmem>>, vector<8x1xf32>,
      %c0_9 = arith.constant 0 : index
      %c0_10 = arith.constant 0 : index
      %14 = vector.load %arg4[%c0_9, %c0_10] : memref<8x1xf32, #tpu.memory_space<vmem>>, vector<8x1xf32>
      %15 = arith.maximumf %14, %4 : vector<8x1xf32>
      %c0_11 = arith.constant 0 : index
      %c0_12 = arith.constant 0 : index
      %16 = vector.load %arg4[%c0_11, %c0_12] : memref<8x1xf32, #tpu.memory_space<vmem>>, vector<8x1xf32>
      tpu.vector_store %arg4[%c0_11, %c0_12], %15 {strides = array<i32>} : memref<8x1xf32, #tpu.memory_space<vmem>>, vector<8x1xf32>,
    } else {
    }
    return
  }
  func.func @transform_0(%arg0: i32, %arg1: i32) -> (i32, i32) {
    %c0_i32 = arith.constant 0 : i32
    return %arg0, %arg1 : i32, i32
  }
  func.func @transform_1(%arg0: i32, %arg1: i32) -> (i32, i32) {
    %c0_i32 = arith.constant 0 : i32
    %c0_i32_0 = arith.constant 0 : i32
    return %arg0, %c0_i32 : i32, i32
  }
  func.func @transform_2(%arg0: i32, %arg1: i32) -> (i32, i32) {
    %c0_i32 = arith.constant 0 : i32
    %c0_i32_0 = arith.constant 0 : i32
    return %arg0, %c0_i32 : i32, i32
  }
}

</mosaic_0001>

<llo_original>
// kernel: _current_minmax.1
$region0: #{_current_minmax.1}
  #allocation0 [shape = 'u32[]', space=smem, size = 0x4, offset = 0x4, fixed_abs, tag = 'smem constant byte address 0x4 - core index']
  #allocation1 [shape = 'u32[144,128]{1,0:T(1,128)}', space=vmem, size = 0x12000, scoped, tag = 'internal scratch']
  %s0 = inlined_call_operand.vmem [shape: f32[16,128], index: 0, kind: input, shape index: {}]
  %s1 = inlined_call_operand.vmem [shape: f32[16,1], index: 1, kind: output, shape index: {0}]
  %s2 = inlined_call_operand.vmem [shape: f32[16,1], index: 2, kind: output, shape index: {1}]
  %3 = xla_tuple %s1, %s2
  %s4 = sld [smem:[#allocation0]]
  $region53: #{_current_minmax.1} parent=0
    _
  %s6 = ssub.s32 1, %s4
  %s7 = scalar_select 0, %s6, %s4
  loop: start=0, step=1, limit=4
  $region2: #{_current_minmax.1} parent=0 // loop_pre_header
    _
  $region3: #{_current_minmax.1} parent=0 // loop_header
    %s9 = sphi 0, %s13
    %p10 = scmp.ge.s32.totalorder %s9, 4
    %s16 = sphi 0, %s28
    %s17 = sphi 0, %s24
    %s18 = sphi 0, %s16
    %s19 = sphi 0, %s17
    %s20 = sphi 0, %s18
    %s21 = sphi 0, %s19
    %s33 = sphi 0, %s35
    %s36 = sphi 0, %s33
    %s37 = sphi 0, %s36
    %s53 = sphi 0, %s37
    %s59 = sphi 0, %s61
    %s62 = sphi 0, %s59
    %s63 = sphi 0, %s62
    %s79 = sphi 0, %s63
    %s85 = sphi 0, %s87
    %s88 = sphi 0, %s85
    %s89 = sphi 0, %s88
    %s105 = sphi 0, %s89
  $region4: #{_current_minmax.1} parent=0 // loop_header_branch
    %12 = sbr.rel (%p10) target = $region8
  $region5: #{_current_minmax.1} parent=0 // loop_body
    %s14 = ssub.s32 %s9, 1
    %s15 = ssub.s32 %s9, 2
    %s22 = sadd.s32 1, %s17
    %p23 = scmp.ge.s32.totalorder %s22, 1
    %s24 = scalar_select %p23, 0, %s22
    %s25 = sadd.s32 1, %s16
    %s26 = scalar_select %p23, %s25, %s16
    %p27 = scmp.ge.s32.totalorder %s26, 2
    %s28 = scalar_select %p27, 0, %s26
    %s29 = ssub.s32 %s16, %s28
    %s30 = ssub.s32 %s17, %s24
    %s31 = sor.u32 %s29, %s30
    %p32 = scmp.eq.s32.totalorder %s31, 0
    %s34 = sadd.s32 %s33, 1
    %s35 = scalar_select %p32, %s33, %s34
    %p38 = pneg %p32
    %p39 = scmp.eq.s32.totalorder %s9, 1
    %p40 = por %p38, %p39
    %p41 = scmp.ne.s32.totalorder %s33, %s36
    %p42 = scmp.eq.s32.totalorder %s9, 0
    %p43 = por %p41, %p42
    %p44 = scmp.ne.s32.totalorder %s33, %s36
    %p45 = scmp.eq.s32.totalorder %s14, 1
    %p46 = por %p44, %p45
    %p47 = scmp.ne.s32.totalorder %s36, %s37
    %p48 = scmp.eq.s32.totalorder %s14, 0
    %p49 = por %p47, %p48
    %p50 = scmp.ne.s32.totalorder %s36, %s37
    %p51 = scmp.eq.s32.totalorder %s15, 1
    %p52 = por %p50, %p51
    %p54 = scmp.ne.s32.totalorder %s37, %s53
    %p55 = scmp.eq.s32.totalorder %s15, 0
    %p56 = por %p54, %p55
    %s57 = ssub.s32 %s16, %s28
    %p58 = scmp.eq.s32.totalorder %s57, 0
    %s60 = sadd.s32 %s59, 1
    %s61 = scalar_select %p58, %s59, %s60
    %p64 = pneg %p58
    %p65 = scmp.eq.s32.totalorder %s9, 1
    %p66 = por %p64, %p65
    %p67 = scmp.ne.s32.totalorder %s59, %s62
    %p68 = scmp.eq.s32.totalorder %s9, 0
    %p69 = por %p67, %p68
    %p70 = scmp.ne.s32.totalorder %s59, %s62
    %p71 = scmp.eq.s32.totalorder %s14, 1
    %p72 = por %p70, %p71
    %p73 = scmp.ne.s32.totalorder %s62, %s63
    %p74 = scmp.eq.s32.totalorder %s14, 0
    %p75 = por %p73, %p74
    %p76 = scmp.ne.s32.totalorder %s62, %s63
    %p77 = scmp.eq.s32.totalorder %s15, 1
    %p78 = por %p76, %p77
    %p80 = scmp.ne.s32.totalorder %s63, %s79
    %p81 = scmp.eq.s32.totalorder %s15, 0
    %p82 = por %p80, %p81
    %s83 = ssub.s32 %s16, %s28
    %p84 = scmp.eq.s32.totalorder %s83, 0
    %s86 = sadd.s32 %s85, 1
    %s87 = scalar_select %p84, %s85, %s86
    %p90 = pneg %p84
    %p91 = scmp.eq.s32.totalorder %s9, 1
    %p92 = por %p90, %p91
    %p93 = scmp.ne.s32.totalorder %s85, %s88
    %p94 = scmp.eq.s32.totalorder %s9, 0
    %p95 = por %p93, %p94
    %p96 = scmp.ne.s32.totalorder %s85, %s88
    %p97 = scmp.eq.s32.totalorder %s14, 1
    %p98 = por %p96, %p97
    %p99 = scmp.ne.s32.totalorder %s88, %s89
    %p100 = scmp.eq.s32.totalorder %s14, 0
    %p101 = por %p99, %p100
    %p102 = scmp.ne.s32.totalorder %s88, %s89
    %p103 = scmp.eq.s32.totalorder %s15, 1
    %p104 = por %p102, %p103
    %p106 = scmp.ne.s32.totalorder %s89, %s105
    %p107 = scmp.eq.s32.totalorder %s15, 0
    %p108 = por %p106, %p107
    %p109 = scmp.le.s32.totalorder 1, %s9
    %p110 = scmp.lt.s32.totalorder %s9, 3
    %p111 = pnand %p109, %p110
    %p112 = pneg %p111
    // Predicated region
    $region9: #{_current_minmax.1} parent=5 // pred_check
      _
    $region10: #{_current_minmax.1} parent=5 // pred_check_branch
      %114 = sbr.rel (%p111) target = $region12
    $region11: #{_current_minmax.1} parent=5 // pred_region
      %s115 = ssub.s32 %s9, 1
    $region12: #{_current_minmax.1} parent=5 // pred_fallthru
      _
    %p116 = scmp.lt.s32.totalorder %s9, 2
    // Predicated region
    $region13: #{_current_minmax.1} parent=5 // pred_check
      %p117 = pneg %p116
    $region14: #{_current_minmax.1} parent=5 // pred_check_branch
      %119 = sbr.rel (%p117) target = $region16
    $region15: #{_current_minmax.1} parent=5 // pred_region
      // Predicated region
      $region17: #{_current_minmax.1} parent=15 // pred_check
        %p120 = pneg %p43
      $region18: #{_current_minmax.1} parent=15 // pred_check_branch
        %122 = sbr.rel (%p120) target = $region20
      $region19: #{_current_minmax.1} parent=15 // pred_region
        %p123 = scmp.lt.s32.totalorder %s16, 1
        %s124 = scalar_select %p123, %s16, 1
        %p125 = scmp.lt.s32.totalorder %s17, 0
        %s126 = scalar_select %p125, %s17, 0
        %s127 = sadd.s32 %s126, %s124
        %s128 = smul.addr %s127, 8
        %s129 = scalar_lea.vmem %s0, %s128
      $region20: #{_current_minmax.1} parent=15 // pred_fallthru
        _
    $region16: #{_current_minmax.1} parent=5 // pred_fallthru
      _
    %p130 = scmp.le.s32.totalorder 1, %s9
    %p131 = scmp.lt.s32.totalorder %s9, 3
    %p132 = pnand %p130, %p131
    %p133 = pneg %p132
    // Predicated region
    $region21: #{_current_minmax.1} parent=5 // pred_check
      _
    $region22: #{_current_minmax.1} parent=5 // pred_check_branch
      %135 = sbr.rel (%p132) target = $region24
    $region23: #{_current_minmax.1} parent=5 // pred_region
      %s136 = ssub.s32 %s9, 1
      %p137 = scmp.lt.s32.totalorder %s18, 1
      %s138 = scalar_select %p137, %s18, 1
      %p139 = scmp.lt.s32.totalorder %s19, 0
      %s140 = scalar_select %p139, %s19, 0
      %s141 = sadd.s32 %s140, %s138
      %s142 = smul.addr %s141, 8
      %s143 = scalar_lea.vmem %s0, %s142
      %p144 = pneg %p49
      %p145 = pneg %p46
      %p146 = pneg %p75
      %p147 = pneg %p72
      %p148 = scmp.lt.s32.totalorder %s18, 1
      %s149 = scalar_select %p148, %s18, 1
      %s150 = smul.addr %s149, 8
      %s151 = scalar_lea.vmem %s1, %s150
      %p152 = pneg %p101
      %p153 = pneg %p98
      %p154 = scmp.lt.s32.totalorder %s18, 1
      %s155 = scalar_select %p154, %s18, 1
      %s156 = smul.addr %s155, 8
      %s157 = scalar_lea.vmem %s2, %s156
      %p158 = scmp.lt.s32.totalorder %s18, 1
      %s159 = scalar_select %p158, %s18, 1
      %p160 = scmp.lt.s32.totalorder %s19, 0
      %s161 = scalar_select %p160, %s19, 0
      %s162 = sadd.s32 %s161, %s159
      %s163 = smul.addr %s162, 8
      %s164 = scalar_lea.vmem %s0, %s163
      %p165 = scmp.lt.s32.totalorder %s18, 1
      %s166 = scalar_select %p165, %s18, 1
      %s167 = smul.addr %s166, 8
      %s168 = scalar_lea.vmem %s1, %s167
      %p169 = scmp.lt.s32.totalorder %s18, 1
      %s170 = scalar_select %p169, %s18, 1
      %s171 = smul.addr %s170, 8
      %s172 = scalar_lea.vmem %s2, %s171
      %v173 = vld [vmem:[%s164] sm:$0xff]
      %174 = vmin.xlane.f32.xlu0 %v173
      %v175 = vpop.xlane.xlu0 %174
      %176 = vmax.xlane.f32.xlu0 %v173
      %v177 = vpop.xlane.xlu0 %176
      %p178 = scmp.eq.s32.totalorder %s19, 0
      // Predicated region
      $region25: #{_current_minmax.1} parent=23 // pred_check
        %p179 = pneg %p178
      $region26: #{_current_minmax.1} parent=23 // pred_check_branch
        %181 = sbr.rel (%p179) target = $region28
      $region27: #{_current_minmax.1} parent=23 // pred_region
        %vm182 = vcmask 7168
        %183 = vst.msk [vmem:[%s168] sm:$0xff] %vm182, %v175
        %184 = vst.msk [vmem:[%s172] sm:$0xff] %vm182, %v177
      $region28: #{_current_minmax.1} parent=23 // pred_fallthru
        _
      %p185 = scmp.gt.s32.totalorder %s19, 0
      // Predicated region
      $region29: #{_current_minmax.1} parent=23 // pred_check
        %p186 = pneg %p185
      $region30: #{_current_minmax.1} parent=23 // pred_check_branch
        %188 = sbr.rel (%p186) target = $region32
      $region31: #{_current_minmax.1} parent=23 // pred_region
        %v189 = vld [vmem:[%s168] sm:$0xff]
        %v190 = vmin.f32 %v189, %v175
        %vm191 = vcmask 7168
        %192 = vst.msk [vmem:[%s168] sm:$0xff] %vm191, %v190
        %v193 = vld [vmem:[%s172] sm:$0xff]
        %v194 = vmax.f32 %v193, %v177
        %195 = vst.msk [vmem:[%s172] sm:$0xff] %vm191, %v194
      $region32: #{_current_minmax.1} parent=23 // pred_fallthru
        _
      %p196 = scmp.lt.s32.totalorder %s18, 1
      %s197 = scalar_select %p196, %s18, 1
      %s198 = smul.addr %s197, 8
      %s199 = scalar_lea.vmem %s1, %s198
      %p200 = scmp.lt.s32.totalorder %s18, 1
      %s201 = scalar_select %p200, %s18, 1
      %s202 = smul.addr %s201, 8
      %s203 = scalar_lea.vmem %s2, %s202
      // Predicated region
      $region33: #{_current_minmax.1} parent=23 // pred_check
        %p204 = pneg %p72
      $region34: #{_current_minmax.1} parent=23 // pred_check_branch
        %206 = sbr.rel (%p204) target = $region36
      $region35: #{_current_minmax.1} parent=23 // pred_region
        _
      $region36: #{_current_minmax.1} parent=23 // pred_fallthru
        _
      // Predicated region
      $region37: #{_current_minmax.1} parent=23 // pred_check
        %p207 = pneg %p98
      $region38: #{_current_minmax.1} parent=23 // pred_check_branch
        %209 = sbr.rel (%p207) target = $region40
      $region39: #{_current_minmax.1} parent=23 // pred_region
        _
      $region40: #{_current_minmax.1} parent=23 // pred_fallthru
        _
    $region24: #{_current_minmax.1} parent=5 // pred_fallthru
      _
    %p210 = scmp.le.s32.totalorder 2, %s9
    // Predicated region
    $region41: #{_current_minmax.1} parent=5 // pred_check
      %p211 = pneg %p210
    $region42: #{_current_minmax.1} parent=5 // pred_check_branch
      %213 = sbr.rel (%p211) target = $region44
    $region43: #{_current_minmax.1} parent=5 // pred_region
      %s214 = ssub.s32 %s9, 2
      // Predicated region
      $region45: #{_current_minmax.1} parent=43 // pred_check
        %p215 = pneg %p78
      $region46: #{_current_minmax.1} parent=43 // pred_check_branch
        %217 = sbr.rel (%p215) target = $region48
      $region47: #{_current_minmax.1} parent=43 // pred_region
        %p218 = scmp.lt.s32.totalorder %s20, 1
        %s219 = scalar_select %p218, %s20, 1
        %s220 = smul.addr %s219, 8
        %s221 = scalar_lea.vmem %s1, %s220
      $region48: #{_current_minmax.1} parent=43 // pred_fallthru
        _
      // Predicated region
      $region49: #{_current_minmax.1} parent=43 // pred_check
        %p222 = pneg %p104
      $region50: #{_current_minmax.1} parent=43 // pred_check_branch
        %224 = sbr.rel (%p222) target = $region52
      $region51: #{_current_minmax.1} parent=43 // pred_region
        %p225 = scmp.lt.s32.totalorder %s20, 1
        %s226 = scalar_select %p225, %s20, 1
        %s227 = smul.addr %s226, 8
        %s228 = scalar_lea.vmem %s2, %s227
      $region52: #{_current_minmax.1} parent=43 // pred_fallthru
        _
    $region44: #{_current_minmax.1} parent=5 // pred_fallthru
      _
  $region6: #{_current_minmax.1} parent=0 // loop_footer
    %s13 = sadd.s32 1, %s9
  $region7: #{_current_minmax.1} parent=0 // loop_footer_branch
    %8 = sbr.rel target = $region3
  $region8: #{_current_minmax.1} parent=0 // loop_exit
    _

</llo_original>
